<compile_context>
chip_gen: v7x
topology: tpu7x:2x2x1
jax: 0.10.0
libtpu: 0.0.40
codegen_flags: <defaults>
</compile_context>

<pallas_src>
import jax
import jax.numpy as jnp
from jax.experimental import pallas as pl
from jax.experimental.pallas import tpu as pltpu


# ---------------------------------------------------------------------------
# Fast path: tables VMEM-resident, gather = dynamic row loads (no DMA).
# ---------------------------------------------------------------------------
def _gather_vmem_kernel(tidx_ref, sidx_ref,      # scalar prefetch (SMEM)
                        ttab_ref, stab_ref,      # tables (full blocks, VMEM)
                        tout_ref, sout_ref):     # outputs (VMEM blocks)
    tile_b = tout_ref.shape[0]
    base = pl.program_id(0) * tile_b
    for r in range(tile_b):                      # static unroll over the tile
        ti = tidx_ref[base + r]
        si = sidx_ref[base + r]
        tout_ref[pl.ds(r, 1), :] = ttab_ref[pl.ds(ti, 1), :]
        sout_ref[pl.ds(r, 1), :] = stab_ref[pl.ds(si, 1), :]


# ---------------------------------------------------------------------------
# Big-table path: tables stay in HBM, gather = per-row async DMA.
# ---------------------------------------------------------------------------
def _gather_hbm_kernel(tidx_ref, sidx_ref,       # scalar prefetch (SMEM)
                       ttab_ref, stab_ref,       # tables (HBM, pl.ANY)
                       tout_ref, sout_ref,       # outputs (VMEM blocks)
                       sem_ref):                 # DMA semaphores (2, tile_b)
    tile_b = tout_ref.shape[0]
    base = pl.program_id(0) * tile_b

    # Start all 2*tile_b row DMAs before waiting on any so they overlap.
    copies = []
    for r in range(tile_b):
        ti = tidx_ref[base + r]
        si = sidx_ref[base + r]
        ct = pltpu.make_async_copy(ttab_ref.at[pl.ds(ti, 1), :],
                                   tout_ref.at[pl.ds(r, 1), :],
                                   sem_ref.at[0, r])
        cs = pltpu.make_async_copy(stab_ref.at[pl.ds(si, 1), :],
                                   sout_ref.at[pl.ds(r, 1), :],
                                   sem_ref.at[1, r])
        ct.start()
        cs.start()
        copies.append(ct)
        copies.append(cs)
    for c in copies:
        c.wait()


def topic_encoder_forward(topic_idx, subtopic_idx, topic_table, subtopic_table,
                          *, tile_b=32, vmem_table_budget_bytes=4 * 1024 * 1024):
    """topic_idx, subtopic_idx: (B,) int; tables: (vocab, dim) float."""
    B = topic_idx.shape[0]
    topic_size, topic_dim = topic_table.shape
    subtopic_size, subtopic_dim = subtopic_table.shape

    tile_b = max(1, min(tile_b, B))
    b_pad = -(-B // tile_b) * tile_b             # round B up to tile_b multiple
    grid = (b_pad // tile_b,)

    # Pad indices with 0 (the padding row); padded rows are sliced off below.
    tidx = jnp.zeros((b_pad,), jnp.int32).at[:B].set(topic_idx.astype(jnp.int32))
    sidx = jnp.zeros((b_pad,), jnp.int32).at[:B].set(subtopic_idx.astype(jnp.int32))

    out_shape = (
        jax.ShapeDtypeStruct((b_pad, topic_dim), topic_table.dtype),
        jax.ShapeDtypeStruct((b_pad, subtopic_dim), subtopic_table.dtype),
    )
    out_specs = [
        pl.BlockSpec((tile_b, topic_dim), lambda i, tids, sids: (i, 0)),
        pl.BlockSpec((tile_b, subtopic_dim), lambda i, tids, sids: (i, 0)),
    ]

    table_bytes = (topic_table.size * topic_table.dtype.itemsize
                   + subtopic_table.size * subtopic_table.dtype.itemsize)

    if table_bytes <= vmem_table_budget_bytes:
        # Tables fit VMEM comfortably: in-kernel dynamic-load gather, no DMAs.
        t_out, s_out = pl.pallas_call(
            _gather_vmem_kernel,
            out_shape=out_shape,
            grid_spec=pltpu.PrefetchScalarGridSpec(
                num_scalar_prefetch=2,
                grid=grid,
                in_specs=[
                    pl.BlockSpec((topic_size, topic_dim),
                                 lambda i, tids, sids: (0, 0)),
                    pl.BlockSpec((subtopic_size, subtopic_dim),
                                 lambda i, tids, sids: (0, 0)),
                ],
                out_specs=out_specs,
            ),
            compiler_params=pltpu.CompilerParams(
                dimension_semantics=("parallel",),
            ),
        )(tidx, sidx, topic_table, subtopic_table)
    else:
        # Tables too large for VMEM residency: HBM row-gather via DMA.
        t_out, s_out = pl.pallas_call(
            _gather_hbm_kernel,
            out_shape=out_shape,
            grid_spec=pltpu.PrefetchScalarGridSpec(
                num_scalar_prefetch=2,
                grid=grid,
                in_specs=[
                    pl.BlockSpec(memory_space=pl.ANY),
                    pl.BlockSpec(memory_space=pl.ANY),
                ],
                out_specs=out_specs,
                scratch_shapes=[pltpu.SemaphoreType.DMA((2, tile_b))],
            ),
            compiler_params=pltpu.CompilerParams(
                dimension_semantics=("parallel",),
            ),
        )(tidx, sidx, topic_table, subtopic_table)

    # th.hstack on 2-D tensors == concat along dim 1. Done once outside the
    # kernel so each in-kernel output store stays full-width (lane-dense).
    return jnp.concatenate([t_out[:B], s_out[:B]], axis=1)


if __name__ == "__main__":
    # Small, module-consistent sizes.
    B = 8
    topic_size, topic_dim = 16, 32
    subtopic_size, subtopic_dim = 24, 64

    key = jax.random.PRNGKey(0)
    k_t, k_s, k_i1, k_i2 = jax.random.split(key, 4)

    # nn.Embedding ~ N(0,1); padding_idx=0 row zeroed.
    topic_table = jax.random.normal(k_t, (topic_size, topic_dim), dtype=jnp.float32)
    topic_table = topic_table.at[0].set(0.0)
    subtopic_table = jax.random.normal(k_s, (subtopic_size, subtopic_dim),
                                       dtype=jnp.float32)
    subtopic_table = subtopic_table.at[0].set(0.0)

    # Index inputs (include zeros to exercise the padding row).
    topic_idx = jax.random.randint(k_i1, (B,), 0, topic_size, dtype=jnp.int32)
    subtopic_idx = jax.random.randint(k_i2, (B,), 0, subtopic_size, dtype=jnp.int32)

    out = topic_encoder_forward(topic_idx, subtopic_idx,
                                topic_table, subtopic_table)
    out = jax.block_until_ready(out)

    # Pure-JAX reference of the PyTorch forward.
    ref = jnp.concatenate(
        [topic_table[topic_idx], subtopic_table[subtopic_idx]], axis=1
    )

    assert out.shape == (B, topic_dim + subtopic_dim), out.shape
    assert jnp.allclose(out, ref, atol=1e-6), "mismatch vs reference"
    print("KERNEL_OK")
</pallas_src>

<mosaic_0001>
module attributes {stable_mosaic.version = 11 : i64} {
  func.func @_gather_vmem_kernel(%arg0: i32, %arg1: memref<8xi32, #tpu.memory_space<smem>>, %arg2: memref<8xi32, #tpu.memory_space<smem>>, %arg3: memref<16x32xf32, #tpu.memory_space<vmem>>, %arg4: memref<24x64xf32, #tpu.memory_space<vmem>>, %arg5: memref<8x32xf32, #tpu.memory_space<vmem>>, %arg6: memref<8x64xf32, #tpu.memory_space<vmem>>) attributes {dimension_semantics = [#tpu.dimension_semantics<parallel>], iteration_bounds = array<i64: 1>, scalar_prefetch = 2 : i64, scratch_operands = 0 : i64, tpu.core_type = #tpu.core_type<tc>, window_params = [{pipeline_mode = #tpu.pipeline_mode<synchronous>, transform_indices = @transform_0, window_bounds = array<i64: 16, 32>}, {pipeline_mode = #tpu.pipeline_mode<synchronous>, transform_indices = @transform_1, window_bounds = array<i64: 24, 64>}, {transform_indices = @transform_2, window_bounds = array<i64: 8, 32>}, {transform_indices = @transform_3, window_bounds = array<i64: 8, 64>}]} {
    %c8_i32 = arith.constant 8 : i32
    %0 = arith.muli %arg0, %c8_i32 : i32
    %c0_i32 = arith.constant 0 : i32
    %1 = arith.addi %0, %c0_i32 : i32
    %2 = arith.index_cast %1 : i32 to index
    %3 = memref.load %arg1[%2] : memref<8xi32, #tpu.memory_space<smem>>
    %c0_i32_0 = arith.constant 0 : i32
    %4 = arith.addi %0, %c0_i32_0 : i32
    %5 = arith.index_cast %4 : i32 to index
    %6 = memref.load %arg2[%5] : memref<8xi32, #tpu.memory_space<smem>>
    %7 = arith.index_cast %3 : i32 to index
    %c0 = arith.constant 0 : index
    %8 = vector.load %arg3[%7, %c0] : memref<16x32xf32, #tpu.memory_space<vmem>>, vector<1x32xf32>
    %c0_1 = arith.constant 0 : index
    %c0_2 = arith.constant 0 : index
    %9 = vector.load %arg5[%c0_1, %c0_2] : memref<8x32xf32, #tpu.memory_space<vmem>>, vector<1x32xf32>
    tpu.vector_store %arg5[%c0_1, %c0_2], %8 {strides = array<i32>} : memref<8x32xf32, #tpu.memory_space<vmem>>, vector<1x32xf32>,
    %10 = arith.index_cast %6 : i32 to index
    %c0_3 = arith.constant 0 : index
    %11 = vector.load %arg4[%10, %c0_3] : memref<24x64xf32, #tpu.memory_space<vmem>>, vector<1x64xf32>
    %c0_4 = arith.constant 0 : index
    %c0_5 = arith.constant 0 : index
    %12 = vector.load %arg6[%c0_4, %c0_5] : memref<8x64xf32, #tpu.memory_space<vmem>>, vector<1x64xf32>
    tpu.vector_store %arg6[%c0_4, %c0_5], %11 {strides = array<i32>} : memref<8x64xf32, #tpu.memory_space<vmem>>, vector<1x64xf32>,
    %c1_i32 = arith.constant 1 : i32
    %13 = arith.addi %0, %c1_i32 : i32
    %14 = arith.index_cast %13 : i32 to index
    %15 = memref.load %arg1[%14] : memref<8xi32, #tpu.memory_space<smem>>
    %c1_i32_6 = arith.constant 1 : i32
    %16 = arith.addi %0, %c1_i32_6 : i32
    %17 = arith.index_cast %16 : i32 to index
    %18 = memref.load %arg2[%17] : memref<8xi32, #tpu.memory_space<smem>>
    %19 = arith.index_cast %15 : i32 to index
    %c0_7 = arith.constant 0 : index
    %20 = vector.load %arg3[%19, %c0_7] : memref<16x32xf32, #tpu.memory_space<vmem>>, vector<1x32xf32>
    %c1 = arith.constant 1 : index
    %c0_8 = arith.constant 0 : index
    %21 = vector.load %arg5[%c1, %c0_8] : memref<8x32xf32, #tpu.memory_space<vmem>>, vector<1x32xf32>
    tpu.vector_store %arg5[%c1, %c0_8], %20 {strides = array<i32>} : memref<8x32xf32, #tpu.memory_space<vmem>>, vector<1x32xf32>,
    %22 = arith.index_cast %18 : i32 to index
    %c0_9 = arith.constant 0 : index
    %23 = vector.load %arg4[%22, %c0_9] : memref<24x64xf32, #tpu.memory_space<vmem>>, vector<1x64xf32>
    %c1_10 = arith.constant 1 : index
    %c0_11 = arith.constant 0 : index
    %24 = vector.load %arg6[%c1_10, %c0_11] : memref<8x64xf32, #tpu.memory_space<vmem>>, vector<1x64xf32>
    tpu.vector_store %arg6[%c1_10, %c0_11], %23 {strides = array<i32>} : memref<8x64xf32, #tpu.memory_space<vmem>>, vector<1x64xf32>,
    %c2_i32 = arith.constant 2 : i32
    %25 = arith.addi %0, %c2_i32 : i32
    %26 = arith.index_cast %25 : i32 to index
    %27 = memref.load %arg1[%26] : memref<8xi32, #tpu.memory_space<smem>>
    %c2_i32_12 = arith.constant 2 : i32
    %28 = arith.addi %0, %c2_i32_12 : i32
    %29 = arith.index_cast %28 : i32 to index
    %30 = memref.load %arg2[%29] : memref<8xi32, #tpu.memory_space<smem>>
    %31 = arith.index_cast %27 : i32 to index
    %c0_13 = arith.constant 0 : index
    %32 = vector.load %arg3[%31, %c0_13] : memref<16x32xf32, #tpu.memory_space<vmem>>, vector<1x32xf32>
    %c2 = arith.constant 2 : index
    %c0_14 = arith.constant 0 : index
    %33 = vector.load %arg5[%c2, %c0_14] : memref<8x32xf32, #tpu.memory_space<vmem>>, vector<1x32xf32>
    tpu.vector_store %arg5[%c2, %c0_14], %32 {strides = array<i32>} : memref<8x32xf32, #tpu.memory_space<vmem>>, vector<1x32xf32>,
    %34 = arith.index_cast %30 : i32 to index
    %c0_15 = arith.constant 0 : index
    %35 = vector.load %arg4[%34, %c0_15] : memref<24x64xf32, #tpu.memory_space<vmem>>, vector<1x64xf32>
    %c2_16 = arith.constant 2 : index
    %c0_17 = arith.constant 0 : index
    %36 = vector.load %arg6[%c2_16, %c0_17] : memref<8x64xf32, #tpu.memory_space<vmem>>, vector<1x64xf32>
    tpu.vector_store %arg6[%c2_16, %c0_17], %35 {strides = array<i32>} : memref<8x64xf32, #tpu.memory_space<vmem>>, vector<1x64xf32>,
    %c3_i32 = arith.constant 3 : i32
    %37 = arith.addi %0, %c3_i32 : i32
    %38 = arith.index_cast %37 : i32 to index
    %39 = memref.load %arg1[%38] : memref<8xi32, #tpu.memory_space<smem>>
    %c3_i32_18 = arith.constant 3 : i32
    %40 = arith.addi %0, %c3_i32_18 : i32
    %41 = arith.index_cast %40 : i32 to index
    %42 = memref.load %arg2[%41] : memref<8xi32, #tpu.memory_space<smem>>
    %43 = arith.index_cast %39 : i32 to index
    %c0_19 = arith.constant 0 : index
    %44 = vector.load %arg3[%43, %c0_19] : memref<16x32xf32, #tpu.memory_space<vmem>>, vector<1x32xf32>
    %c3 = arith.constant 3 : index
    %c0_20 = arith.constant 0 : index
    %45 = vector.load %arg5[%c3, %c0_20] : memref<8x32xf32, #tpu.memory_space<vmem>>, vector<1x32xf32>
    tpu.vector_store %arg5[%c3, %c0_20], %44 {strides = array<i32>} : memref<8x32xf32, #tpu.memory_space<vmem>>, vector<1x32xf32>,
    %46 = arith.index_cast %42 : i32 to index
    %c0_21 = arith.constant 0 : index
    %47 = vector.load %arg4[%46, %c0_21] : memref<24x64xf32, #tpu.memory_space<vmem>>, vector<1x64xf32>
    %c3_22 = arith.constant 3 : index
    %c0_23 = arith.constant 0 : index
    %48 = vector.load %arg6[%c3_22, %c0_23] : memref<8x64xf32, #tpu.memory_space<vmem>>, vector<1x64xf32>
    tpu.vector_store %arg6[%c3_22, %c0_23], %47 {strides = array<i32>} : memref<8x64xf32, #tpu.memory_space<vmem>>, vector<1x64xf32>,
    %c4_i32 = arith.constant 4 : i32
    %49 = arith.addi %0, %c4_i32 : i32
    %50 = arith.index_cast %49 : i32 to index
    %51 = memref.load %arg1[%50] : memref<8xi32, #tpu.memory_space<smem>>
    %c4_i32_24 = arith.constant 4 : i32
    %52 = arith.addi %0, %c4_i32_24 : i32
    %53 = arith.index_cast %52 : i32 to index
    %54 = memref.load %arg2[%53] : memref<8xi32, #tpu.memory_space<smem>>
    %55 = arith.index_cast %51 : i32 to index
    %c0_25 = arith.constant 0 : index
    %56 = vector.load %arg3[%55, %c0_25] : memref<16x32xf32, #tpu.memory_space<vmem>>, vector<1x32xf32>
    %c4 = arith.constant 4 : index
    %c0_26 = arith.constant 0 : index
    %57 = vector.load %arg5[%c4, %c0_26] : memref<8x32xf32, #tpu.memory_space<vmem>>, vector<1x32xf32>
    tpu.vector_store %arg5[%c4, %c0_26], %56 {strides = array<i32>} : memref<8x32xf32, #tpu.memory_space<vmem>>, vector<1x32xf32>,
    %58 = arith.index_cast %54 : i32 to index
    %c0_27 = arith.constant 0 : index
    %59 = vector.load %arg4[%58, %c0_27] : memref<24x64xf32, #tpu.memory_space<vmem>>, vector<1x64xf32>
    %c4_28 = arith.constant 4 : index
    %c0_29 = arith.constant 0 : index
    %60 = vector.load %arg6[%c4_28, %c0_29] : memref<8x64xf32, #tpu.memory_space<vmem>>, vector<1x64xf32>
    tpu.vector_store %arg6[%c4_28, %c0_29], %59 {strides = array<i32>} : memref<8x64xf32, #tpu.memory_space<vmem>>, vector<1x64xf32>,
    %c5_i32 = arith.constant 5 : i32
    %61 = arith.addi %0, %c5_i32 : i32
    %62 = arith.index_cast %61 : i32 to index
    %63 = memref.load %arg1[%62] : memref<8xi32, #tpu.memory_space<smem>>
    %c5_i32_30 = arith.constant 5 : i32
    %64 = arith.addi %0, %c5_i32_30 : i32
    %65 = arith.index_cast %64 : i32 to index
    %66 = memref.load %arg2[%65] : memref<8xi32, #tpu.memory_space<smem>>
    %67 = arith.index_cast %63 : i32 to index
    %c0_31 = arith.constant 0 : index
    %68 = vector.load %arg3[%67, %c0_31] : memref<16x32xf32, #tpu.memory_space<vmem>>, vector<1x32xf32>
    %c5 = arith.constant 5 : index
    %c0_32 = arith.constant 0 : index
    %69 = vector.load %arg5[%c5, %c0_32] : memref<8x32xf32, #tpu.memory_space<vmem>>, vector<1x32xf32>
    tpu.vector_store %arg5[%c5, %c0_32], %68 {strides = array<i32>} : memref<8x32xf32, #tpu.memory_space<vmem>>, vector<1x32xf32>,
    %70 = arith.index_cast %66 : i32 to index
    %c0_33 = arith.constant 0 : index
    %71 = vector.load %arg4[%70, %c0_33] : memref<24x64xf32, #tpu.memory_space<vmem>>, vector<1x64xf32>
    %c5_34 = arith.constant 5 : index
    %c0_35 = arith.constant 0 : index
    %72 = vector.load %arg6[%c5_34, %c0_35] : memref<8x64xf32, #tpu.memory_space<vmem>>, vector<1x64xf32>
    tpu.vector_store %arg6[%c5_34, %c0_35], %71 {strides = array<i32>} : memref<8x64xf32, #tpu.memory_space<vmem>>, vector<1x64xf32>,
    %c6_i32 = arith.constant 6 : i32
    %73 = arith.addi %0, %c6_i32 : i32
    %74 = arith.index_cast %73 : i32 to index
    %75 = memref.load %arg1[%74] : memref<8xi32, #tpu.memory_space<smem>>
    %c6_i32_36 = arith.constant 6 : i32
    %76 = arith.addi %0, %c6_i32_36 : i32
    %77 = arith.index_cast %76 : i32 to index
    %78 = memref.load %arg2[%77] : memref<8xi32, #tpu.memory_space<smem>>
    %79 = arith.index_cast %75 : i32 to index
    %c0_37 = arith.constant 0 : index
    %80 = vector.load %arg3[%79, %c0_37] : memref<16x32xf32, #tpu.memory_space<vmem>>, vector<1x32xf32>
    %c6 = arith.constant 6 : index
    %c0_38 = arith.constant 0 : index
    %81 = vector.load %arg5[%c6, %c0_38] : memref<8x32xf32, #tpu.memory_space<vmem>>, vector<1x32xf32>
    tpu.vector_store %arg5[%c6, %c0_38], %80 {strides = array<i32>} : memref<8x32xf32, #tpu.memory_space<vmem>>, vector<1x32xf32>,
    %82 = arith.index_cast %78 : i32 to index
    %c0_39 = arith.constant 0 : index
    %83 = vector.load %arg4[%82, %c0_39] : memref<24x64xf32, #tpu.memory_space<vmem>>, vector<1x64xf32>
    %c6_40 = arith.constant 6 : index
    %c0_41 = arith.constant 0 : index
    %84 = vector.load %arg6[%c6_40, %c0_41] : memref<8x64xf32, #tpu.memory_space<vmem>>, vector<1x64xf32>
    tpu.vector_store %arg6[%c6_40, %c0_41], %83 {strides = array<i32>} : memref<8x64xf32, #tpu.memory_space<vmem>>, vector<1x64xf32>,
    %c7_i32 = arith.constant 7 : i32
    %85 = arith.addi %0, %c7_i32 : i32
    %86 = arith.index_cast %85 : i32 to index
    %87 = memref.load %arg1[%86] : memref<8xi32, #tpu.memory_space<smem>>
    %c7_i32_42 = arith.constant 7 : i32
    %88 = arith.addi %0, %c7_i32_42 : i32
    %89 = arith.index_cast %88 : i32 to index
    %90 = memref.load %arg2[%89] : memref<8xi32, #tpu.memory_space<smem>>
    %91 = arith.index_cast %87 : i32 to index
    %c0_43 = arith.constant 0 : index
    %92 = vector.load %arg3[%91, %c0_43] : memref<16x32xf32, #tpu.memory_space<vmem>>, vector<1x32xf32>
    %c7 = arith.constant 7 : index
    %c0_44 = arith.constant 0 : index
    %93 = vector.load %arg5[%c7, %c0_44] : memref<8x32xf32, #tpu.memory_space<vmem>>, vector<1x32xf32>
    tpu.vector_store %arg5[%c7, %c0_44], %92 {strides = array<i32>} : memref<8x32xf32, #tpu.memory_space<vmem>>, vector<1x32xf32>,
    %94 = arith.index_cast %90 : i32 to index
    %c0_45 = arith.constant 0 : index
    %95 = vector.load %arg4[%94, %c0_45] : memref<24x64xf32, #tpu.memory_space<vmem>>, vector<1x64xf32>
    %c7_46 = arith.constant 7 : index
    %c0_47 = arith.constant 0 : index
    %96 = vector.load %arg6[%c7_46, %c0_47] : memref<8x64xf32, #tpu.memory_space<vmem>>, vector<1x64xf32>
    tpu.vector_store %arg6[%c7_46, %c0_47], %95 {strides = array<i32>} : memref<8x64xf32, #tpu.memory_space<vmem>>, vector<1x64xf32>,
    return
  }
  func.func @transform_0(%arg0: i32, %arg1: memref<8xi32, #tpu.memory_space<smem>>, %arg2: memref<8xi32, #tpu.memory_space<smem>>) -> (i32, i32) {
    %c0_i32 = arith.constant 0 : i32
    %c0_i32_0 = arith.constant 0 : i32
    %c0_i32_1 = arith.constant 0 : i32
    return %c0_i32, %c0_i32_0 : i32, i32
  }
  func.func @transform_1(%arg0: i32, %arg1: memref<8xi32, #tpu.memory_space<smem>>, %arg2: memref<8xi32, #tpu.memory_space<smem>>) -> (i32, i32) {
    %c0_i32 = arith.constant 0 : i32
    %c0_i32_0 = arith.constant 0 : i32
    %c0_i32_1 = arith.constant 0 : i32
    return %c0_i32, %c0_i32_0 : i32, i32
  }
  func.func @transform_2(%arg0: i32, %arg1: memref<8xi32, #tpu.memory_space<smem>>, %arg2: memref<8xi32, #tpu.memory_space<smem>>) -> (i32, i32) {
    %c0_i32 = arith.constant 0 : i32
    %c0_i32_0 = arith.constant 0 : i32
    return %arg0, %c0_i32 : i32, i32
  }
  func.func @transform_3(%arg0: i32, %arg1: memref<8xi32, #tpu.memory_space<smem>>, %arg2: memref<8xi32, #tpu.memory_space<smem>>) -> (i32, i32) {
    %c0_i32 = arith.constant 0 : i32
    %c0_i32_0 = arith.constant 0 : i32
    return %arg0, %c0_i32 : i32, i32
  }
}

</mosaic_0001>

<llo_original>
// kernel: tpu_custom_call.1
$region0: #{tpu_custom_call.1}
  #allocation0 [shape = 'u32[]', space=smem, size = 0x4, offset = 0x4, fixed_abs, tag = 'smem constant byte address 0x4 - core index']
  #allocation1 [shape = 'u32[144,128]{1,0:T(1,128)}', space=vmem, size = 0x12000, scoped, tag = 'internal scratch']
  #allocation2 [shape = 's32[1]{0}', space=sflag, size = 0x4, scoped, tag = 'scoped memory for tpu_custom_call.1']
  #allocation3 [shape = 'u8[512]{0}', space=smem, size = 0x200, scoped, tag = 'prefetched SMEM operand 0']
  #allocation4 [shape = 'u8[512]{0}', space=smem, size = 0x200, scoped, tag = 'prefetched SMEM operand 1']
  %s0 = inlined_call_operand.hbm [shape: s32[8], index: 0, kind: input, shape index: {}]
  %s1 = inlined_call_operand.vmem [shape: s32[8], index: 1, kind: input, shape index: {}]
  %s2 = inlined_call_operand.hbm [shape: f32[16,32], index: 2, kind: input, shape index: {}]
  %s3 = inlined_call_operand.hbm [shape: f32[24,64], index: 3, kind: input, shape index: {}]
  %s4 = inlined_call_operand.hbm [shape: f32[8,32], index: 4, kind: output, shape index: {0}]
  %s5 = inlined_call_operand.hbm [shape: f32[8,64], index: 5, kind: output, shape index: {1}]
  %6 = xla_tuple %s4, %s5
  %s7 = sld [smem:[#allocation0]]
  $region34: #{tpu_custom_call.1} parent=0
    _
  %s9 = ssub.s32 1, %s7
  %s10 = scalar_select 0, %s9, %s7
  %12 = dma.hbm_to_smem %s0, 16, [#allocation3], [#allocation2]
  %s13 = sshll.u32 %s1, 4
  %s14 = int_to_ptr.vmem [resolvable:$true] %s13
  %16 = dma.vmem_to_smem %s14, 16, [#allocation4], [#allocation2]
  %17 = dma.done [#allocation2], 32
  %18 = sfence
  $region1: #{tpu_custom_call.1} parent=0
    #allocation5 [shape = 'u8[8192]{0}', space=vmem, size = 0x2000, scoped, tag = 'input window, operand 2, single buffered']
    #allocation6 [shape = 's32[1]{0}', space=sflag, size = 0x4, scoped, tag = 'scoped memory for tpu_custom_call.1']
    #allocation7 [shape = 's32[1]{0}', space=sflag, size = 0x4, scoped, tag = 'scoped memory for tpu_custom_call.1']
    #allocation8 [shape = 'u8[12288]{0}', space=vmem, size = 0x3000, scoped, tag = 'input window, operand 3, single buffered']
    #allocation9 [shape = 's32[1]{0}', space=sflag, size = 0x4, scoped, tag = 'scoped memory for tpu_custom_call.1']
    #allocation10 [shape = 'u8[4096]{0}', space=vmem, size = 0x1000, scoped, tag = 'output window, operand 0, single buffered']
    #allocation11 [shape = 'u8[4096]{0}', space=vmem, size = 0x1000, scoped, tag = 'output window, operand 1, single buffered']
    #allocation12 [shape = 's32[1]{0}', space=sflag, size = 0x4, scoped, tag = 'scoped memory for tpu_custom_call.1']
    %19 = vsyncpa [#allocation6], 0
    %20 = vsyncpa [#allocation9], 0
    %21 = vsyncpa [#allocation7], 0
    %22 = vsyncpa [#allocation12], 0
    // Predicated region
    $region2: #{tpu_custom_call.1} parent=1 // pred_check
      _
    $region3: #{tpu_custom_call.1} parent=1 // pred_check_branch
      %24 = sbr.rel (0) target = $region5
    $region4: #{tpu_custom_call.1} parent=1 // pred_region
      %s26 = ssub.s32 256, 256
      %27 = vsyncadd [#allocation6], %s26
      %s28 = sshll.u32 [#allocation5], 4
      %s29 = int_to_ptr.vmem [resolvable:$true] %s28
      %34 = dma.hbm_to_vmem [thread:$0]  %s2, 256, %s29, [#allocation6], 128, 128, 8
    $region5: #{tpu_custom_call.1} parent=1 // pred_fallthru
      _
    // Predicated region
    $region6: #{tpu_custom_call.1} parent=1 // pred_check
      _
    $region7: #{tpu_custom_call.1} parent=1 // pred_check_branch
      %36 = sbr.rel (0) target = $region9
    $region8: #{tpu_custom_call.1} parent=1 // pred_region
      %s38 = ssub.s32 384, 384
      %39 = vsyncadd [#allocation9], %s38
      %s40 = sshll.u32 [#allocation8], 4
      %s41 = int_to_ptr.vmem [resolvable:$true] %s40
      %46 = dma.hbm_to_vmem [thread:$0]  %s3, 384, %s41, [#allocation9], 128, 128, 8
    $region9: #{tpu_custom_call.1} parent=1 // pred_fallthru
      _
    // Predicated region
    $region10: #{tpu_custom_call.1} parent=1 // pred_check
      _
    $region11: #{tpu_custom_call.1} parent=1 // pred_check_branch
      %48 = sbr.rel (0) target = $region13
    $region12: #{tpu_custom_call.1} parent=1 // pred_region
      %49 = dma.done [#allocation6], 256
    $region13: #{tpu_custom_call.1} parent=1 // pred_fallthru
      _
    // Predicated region
    $region14: #{tpu_custom_call.1} parent=1 // pred_check
      _
    $region15: #{tpu_custom_call.1} parent=1 // pred_check_branch
      %51 = sbr.rel (0) target = $region17
    $region16: #{tpu_custom_call.1} parent=1 // pred_region
      %52 = dma.done [#allocation9], 384
    $region17: #{tpu_custom_call.1} parent=1 // pred_fallthru
      _
    %s53 = smul.u32 0, 8
    %s54 = sld [smem:[#allocation3 + %s53]]
    %s55 = sld [smem:[#allocation4 + %s53]]
    %s56 = scalar_lea.vmem [#allocation5], %s54
    %v57 = vld [vmem:[%s56] sm:$0x1]
    %vm58 = vcmask 253952
    %59 = vst.msk [vmem:[#allocation10] sm:$0x1] %vm58, %v57
    %s60 = scalar_lea.vmem [#allocation8], %s55
    %v61 = vld [vmem:[%s60] sm:$0x1]
    %vm62 = vcmask 516096
    %63 = vst.msk [vmem:[#allocation11] sm:$0x1] %vm62, %v61
    %s64 = sadd.s32 %s53, 1
    %s65 = sld [smem:[#allocation3 + %s64]]
    %s66 = sld [smem:[#allocation4 + %s64]]
    %s67 = scalar_lea.vmem [#allocation5], %s65
    %v68 = vld [vmem:[%s67] sm:$0x1]
    %69 = vst.msk [vmem:[#allocation10 + $0x1] sm:$0x1] %vm58, %v68
    %s70 = scalar_lea.vmem [#allocation8], %s66
    %v71 = vld [vmem:[%s70] sm:$0x1]
    %72 = vst.msk [vmem:[#allocation11 + $0x1] sm:$0x1] %vm62, %v71
    %s73 = sadd.s32 %s53, 2
    %s74 = sld [smem:[#allocation3 + %s73]]
    %s75 = sld [smem:[#allocation4 + %s73]]
    %s76 = scalar_lea.vmem [#allocation5], %s74
    %v77 = vld [vmem:[%s76] sm:$0x1]
    %78 = vst.msk [vmem:[#allocation10 + $0x2] sm:$0x1] %vm58, %v77
    %s79 = scalar_lea.vmem [#allocation8], %s75
    %v80 = vld [vmem:[%s79] sm:$0x1]
    %81 = vst.msk [vmem:[#allocation11 + $0x2] sm:$0x1] %vm62, %v80
    %s82 = sadd.s32 %s53, 3
    %s83 = sld [smem:[#allocation3 + %s82]]
    %s84 = sld [smem:[#allocation4 + %s82]]
    %s85 = scalar_lea.vmem [#allocation5], %s83
    %v86 = vld [vmem:[%s85] sm:$0x1]
    %87 = vst.msk [vmem:[#allocation10 + $0x3] sm:$0x1] %vm58, %v86
    %s88 = scalar_lea.vmem [#allocation8], %s84
    %v89 = vld [vmem:[%s88] sm:$0x1]
    %90 = vst.msk [vmem:[#allocation11 + $0x3] sm:$0x1] %vm62, %v89
    %s91 = sadd.s32 %s53, 4
    %s92 = sld [smem:[#allocation3 + %s91]]
    %s93 = sld [smem:[#allocation4 + %s91]]
    %s94 = scalar_lea.vmem [#allocation5], %s92
    %v95 = vld [vmem:[%s94] sm:$0x1]
    %96 = vst.msk [vmem:[#allocation10 + $0x4] sm:$0x1] %vm58, %v95
    %s97 = scalar_lea.vmem [#allocation8], %s93
    %v98 = vld [vmem:[%s97] sm:$0x1]
    %99 = vst.msk [vmem:[#allocation11 + $0x4] sm:$0x1] %vm62, %v98
    %s100 = sadd.s32 %s53, 5
    %s101 = sld [smem:[#allocation3 + %s100]]
    %s102 = sld [smem:[#allocation4 + %s100]]
    %s103 = scalar_lea.vmem [#allocation5], %s101
    %v104 = vld [vmem:[%s103] sm:$0x1]
    %105 = vst.msk [vmem:[#allocation10 + $0x5] sm:$0x1] %vm58, %v104
    %s106 = scalar_lea.vmem [#allocation8], %s102
    %v107 = vld [vmem:[%s106] sm:$0x1]
    %108 = vst.msk [vmem:[#allocation11 + $0x5] sm:$0x1] %vm62, %v107
    %s109 = sadd.s32 %s53, 6
    %s110 = sld [smem:[#allocation3 + %s109]]
    %s111 = sld [smem:[#allocation4 + %s109]]
    %s112 = scalar_lea.vmem [#allocation5], %s110
    %v113 = vld [vmem:[%s112] sm:$0x1]
    %114 = vst.msk [vmem:[#allocation10 + $0x6] sm:$0x1] %vm58, %v113
    %s115 = scalar_lea.vmem [#allocation8], %s111
    %v116 = vld [vmem:[%s115] sm:$0x1]
    %117 = vst.msk [vmem:[#allocation11 + $0x6] sm:$0x1] %vm62, %v116
    %s118 = sadd.s32 %s53, 7
    %s119 = sld [smem:[#allocation3 + %s118]]
    %s120 = sld [smem:[#allocation4 + %s118]]
    %s121 = scalar_lea.vmem [#allocation5], %s119
    %v122 = vld [vmem:[%s121] sm:$0x1]
    %123 = vst.msk [vmem:[#allocation10 + $0x7] sm:$0x1] %vm58, %v122
    %s124 = scalar_lea.vmem [#allocation8], %s120
    %v125 = vld [vmem:[%s124] sm:$0x1]
    %126 = vst.msk [vmem:[#allocation11 + $0x7] sm:$0x1] %vm62, %v125
    // Predicated region
    $region18: #{tpu_custom_call.1} parent=1 // pred_check
      _
    $region19: #{tpu_custom_call.1} parent=1 // pred_check_branch
      %128 = sbr.rel (0) target = $region21
    $region20: #{tpu_custom_call.1} parent=1 // pred_region
      %s130 = ssub.s32 128, 128
      %131 = vsyncadd [#allocation7], %s130
      %s133 = sshll.u32 [#allocation10], 4
      %s134 = int_to_ptr.vmem [resolvable:$true] %s133
      %136 = dma.vmem_to_hbm [thread:$0]  %s134, 128, %s4, [#allocation7]
    $region21: #{tpu_custom_call.1} parent=1 // pred_fallthru
      _
    // Predicated region
    $region22: #{tpu_custom_call.1} parent=1 // pred_check
      _
    $region23: #{tpu_custom_call.1} parent=1 // pred_check_branch
      %138 = sbr.rel (0) target = $region25
    $region24: #{tpu_custom_call.1} parent=1 // pred_region
      %s140 = ssub.s32 128, 128
      %141 = vsyncadd [#allocation12], %s140
      %s143 = sshll.u32 [#allocation11], 4
      %s144 = int_to_ptr.vmem [resolvable:$true] %s143
      %146 = dma.vmem_to_hbm [thread:$0]  %s144, 128, %s5, [#allocation12]
    $region25: #{tpu_custom_call.1} parent=1 // pred_fallthru
      _
    // Predicated region
    $region26: #{tpu_custom_call.1} parent=1 // pred_check
      _
    $region27: #{tpu_custom_call.1} parent=1 // pred_check_branch
      %148 = sbr.rel (0) target = $region29
    $region28: #{tpu_custom_call.1} parent=1 // pred_region
      %149 = dma.done [#allocation7], 128
    $region29: #{tpu_custom_call.1} parent=1 // pred_fallthru
      _
    // Predicated region
    $region30: #{tpu_custom_call.1} parent=1 // pred_check
      _
    $region31: #{tpu_custom_call.1} parent=1 // pred_check_branch
      %151 = sbr.rel (0) target = $region33
    $region32: #{tpu_custom_call.1} parent=1 // pred_region
      %152 = dma.done [#allocation12], 128
    $region33: #{tpu_custom_call.1} parent=1 // pred_fallthru
      _
    %153 = vsyncpa [#allocation6], 1
    %154 = vsyncpa [#allocation9], 1
    %155 = vsyncpa [#allocation7], 1
    %156 = vsyncpa [#allocation12], 1

</llo_original>
